<compile_context>
chip_gen: v7x
topology: tpu7x:2x2x1
jax: 0.10.0
libtpu: 0.0.40
codegen_flags: <defaults>
</compile_context>

<pallas_src>
import jax
import jax.numpy as jnp
from jax.experimental import pallas as pl
from jax.experimental.pallas import tpu as pltpu


def message_passing(x, adj, weight, bias, *, batch_block=None, mxu_dtype=None):
    """x: (B, N, d_in), adj: (B, N, N), weight: (d_out, d_in), bias: (d_out,)."""
    B, N, d_in = x.shape
    d_out = weight.shape[0]
    dtype = x.dtype

    # --- batch blocking: amortize per-grid-step overhead --------------------
    if batch_block is None:
        # Largest divisor of B that is <= 8: tiny B collapses into one grid
        # step; large B keeps a multi-step "parallel" axis (megacore on v7x).
        batch_block = max(d for d in range(1, min(B, 8) + 1) if B % d == 0)
    bb = int(batch_block)
    if B % bb != 0:
        raise ValueError(f"batch_block={bb} must divide B={B}")
    grid = (B // bb,)

    # --- lane-dense output: pad d_out up to a multiple of 128 ---------------
    d_out_p = ((d_out + 127) // 128) * 128
    w_t = weight.T.astype(dtype)                         # (d_in, d_out)
    if d_out_p != d_out:
        w_t = jnp.pad(w_t, ((0, 0), (0, d_out_p - d_out)))
        bias = jnp.pad(bias, (0, d_out_p - d_out))
    b2 = bias.reshape(1, d_out_p).astype(dtype)

    # --- fuse the adjacency row-sum into the first matmul --------------------
    x_ext = jnp.concatenate([x, jnp.ones((B, N, 1), dtype)], axis=-1)  # (B,N,d_in+1)
    d_ext = d_in + 1

    def kernel(x_ref, adj_ref, w_ref, b_ref, o_ref):
        w = w_ref[...]                                   # (d_in, d_out_p), hoisted
        b = b_ref[...]                                   # (1, d_out_p)
        w_m = w if mxu_dtype is None else w.astype(mxu_dtype)
        # Static unroll over the batches of this block (bb is small): each
        # iteration is two 2-D MXU matmuls plus a cheap VPU epilogue.
        for i in range(bb):
            adj_i = adj_ref[i]                           # (N, N)
            x_i = x_ref[i]                               # (N, d_in + 1), f32
            adj_m = adj_i if mxu_dtype is None else adj_i.astype(mxu_dtype)
            x_m = x_i if mxu_dtype is None else x_i.astype(mxu_dtype)
            # agg_ext[:, :d_in] = adj @ x ; agg_ext[:, d_in] = row-sum(adj)
            agg_ext = jnp.dot(adj_m, x_m, preferred_element_type=jnp.float32)
            # hoisted reciprocal: N divides instead of N*d_in divides
            inv_norm = 1.0 / (agg_ext[:, d_in:d_ext] + 1.0)        # (N, 1)
            s = (agg_ext[:, :d_in] + x_i[:, :d_in]) * inv_norm     # (N, d_in)
            # NOTE: when d_out < d_in the inv_norm scaling can be deferred past
            # the linear (row scaling commutes with @W); here d_out == d_in so
            # it is kept in spec order for tighter numerical agreement.
            s_m = s if mxu_dtype is None else s.astype(mxu_dtype)
            y = jnp.dot(s_m, w_m, preferred_element_type=jnp.float32) + b
            o_ref[i] = jnp.maximum(y, 0.0).astype(o_ref.dtype)

    # --- VMEM budget: per-step blocks are double-buffered by the pipeliner ---
    step_bytes = 4 * bb * N * (N + d_ext + d_out_p) + 4 * (d_ext * d_out_p + d_out_p)
    vmem_limit = int(min(64 * 2**20, max(32 * 2**20, 4 * step_bytes)))

    out_p = pl.pallas_call(
        kernel,
        out_shape=jax.ShapeDtypeStruct((B, N, d_out_p), dtype),
        grid_spec=pltpu.PrefetchScalarGridSpec(
            num_scalar_prefetch=0,
            grid=grid,
            in_specs=[
                pl.BlockSpec((bb, N, d_ext), lambda g: (g, 0, 0)),
                pl.BlockSpec((bb, N, N), lambda g: (g, 0, 0)),
                pl.BlockSpec((d_in, d_out_p), lambda g: (0, 0)),
                pl.BlockSpec((1, d_out_p), lambda g: (0, 0)),
            ],
            out_specs=pl.BlockSpec((bb, N, d_out_p), lambda g: (g, 0, 0)),
        ),
        compiler_params=pltpu.CompilerParams(
            dimension_semantics=("parallel",),
            vmem_limit_bytes=vmem_limit,
        ),
    )(x_ext, adj, w_t, b2)

    return out_p[..., :d_out] if d_out_p != d_out else out_p


def message_passing_ref(x, adj, weight, bias):
    norm = jnp.sum(adj, axis=2, keepdims=True) + 1.0
    agg = (jnp.einsum("bij,bjd->bid", adj, x) + x) / norm
    y = jnp.einsum("bid,od->bio", agg, weight) + bias
    return jnp.maximum(y, 0.0)


if __name__ == "__main__":
    key = jax.random.PRNGKey(0)
    kx, ka, kw, kb = jax.random.split(key, 4)

    B, N, d_in, d_out = 2, 16, 32, 32

    x = jax.random.normal(kx, (B, N, d_in), dtype=jnp.float32)
    # binary adjacency matrix
    adj = (jax.random.uniform(ka, (B, N, N)) > 0.7).astype(jnp.float32)

    # deterministic Linear(d_in, d_out) params (PyTorch-style uniform bound)
    bound = 1.0 / (d_in ** 0.5)
    weight = jax.random.uniform(kw, (d_out, d_in), minval=-bound, maxval=bound,
                                dtype=jnp.float32)
    bias = jax.random.uniform(kb, (d_out,), minval=-bound, maxval=bound,
                              dtype=jnp.float32)

    # Quantize x / W to bf16-representable values so the MXU's bf16-pass f32
    # matmul introduces no input-truncation differences vs the XLA reference.
    x = x.astype(jnp.bfloat16).astype(jnp.float32)
    weight = weight.astype(jnp.bfloat16).astype(jnp.float32)

    ref = message_passing_ref(x, adj, weight, bias)

    # f32 path (default MXU precision).
    out = jax.block_until_ready(message_passing(x, adj, weight, bias))
    assert out.shape == (B, N, d_out)
    # TPU f32 matmuls use bf16 passes by default; tolerance covers the
    # implementation-dependent pass count of kernel vs XLA reference.
    assert jnp.allclose(out, ref, atol=5e-3, rtol=5e-3), "f32 path mismatch vs reference"

    # bf16 MXU path (adj is exact in bf16; x/W lose ~3 digits).
    out_bf16 = jax.block_until_ready(
        message_passing(x, adj, weight, bias, mxu_dtype=jnp.bfloat16))
    assert jnp.allclose(out_bf16, ref, atol=5e-2, rtol=5e-2), "bf16 path mismatch vs reference"

    print("KERNEL_OK")
</pallas_src>

<mosaic_0001>
module attributes {stable_mosaic.version = 11 : i64} {
  func.func @kernel(%arg0: i32, %arg1: memref<2x16x33xf32, #tpu.memory_space<vmem>>, %arg2: memref<2x16x16xf32, #tpu.memory_space<vmem>>, %arg3: memref<32x128xf32, #tpu.memory_space<vmem>>, %arg4: memref<1x128xf32, #tpu.memory_space<vmem>>, %arg5: memref<2x16x128xf32, #tpu.memory_space<vmem>>) attributes {dimension_semantics = [#tpu.dimension_semantics<parallel>], iteration_bounds = array<i64: 1>, scalar_prefetch = 0 : i64, scratch_operands = 0 : i64, tpu.core_type = #tpu.core_type<tc>, window_params = [{transform_indices = @transform_0, window_bounds = array<i64: 2, 16, 33>}, {transform_indices = @transform_1, window_bounds = array<i64: 2, 16, 16>}, {pipeline_mode = #tpu.pipeline_mode<synchronous>, transform_indices = @transform_2, window_bounds = array<i64: 32, 128>}, {pipeline_mode = #tpu.pipeline_mode<synchronous>, transform_indices = @transform_3, window_bounds = array<i64: 1, 128>}, {transform_indices = @transform_4, window_bounds = array<i64: 2, 16, 128>}]} {
    %c0 = arith.constant 0 : index
    %c0_0 = arith.constant 0 : index
    %0 = vector.load %arg3[%c0, %c0_0] : memref<32x128xf32, #tpu.memory_space<vmem>>, vector<32x128xf32>
    %c0_1 = arith.constant 0 : index
    %c0_2 = arith.constant 0 : index
    %1 = vector.load %arg4[%c0_1, %c0_2] : memref<1x128xf32, #tpu.memory_space<vmem>>, vector<1x128xf32>
    %c0_3 = arith.constant 0 : index
    %c0_4 = arith.constant 0 : index
    %c0_5 = arith.constant 0 : index
    %2 = vector.load %arg2[%c0_3, %c0_4, %c0_5] : memref<2x16x16xf32, #tpu.memory_space<vmem>>, vector<1x16x16xf32>
    %3 = vector.shape_cast %2 : vector<1x16x16xf32> to vector<16x16xf32>
    %c0_6 = arith.constant 0 : index
    %c0_7 = arith.constant 0 : index
    %c0_8 = arith.constant 0 : index
    %4 = vector.load %arg1[%c0_6, %c0_7, %c0_8] : memref<2x16x33xf32, #tpu.memory_space<vmem>>, vector<1x16x33xf32>
    %5 = vector.shape_cast %4 : vector<1x16x33xf32> to vector<16x33xf32>
    %cst = arith.constant dense<0.000000e+00> : vector<16x33xf32>
    %6 = tpu.matmul %3, %5, %cst {dimension_numbers = #tpu.dot_dimension_numbers<[1], [0], [0], [1], [0, 0, 1, 1], [], []>} : vector<16x16xf32>, vector<16x33xf32>, vector<16x33xf32> -> vector<16x33xf32>
    %7 = vector.extract_strided_slice %6 {offsets = [0, 32], sizes = [16, 1], strides = [1, 1]} : vector<16x33xf32> to vector<16x1xf32>
    %cst_9 = arith.constant 1.000000e+00 : f32
    %8 = vector.broadcast %cst_9 : f32 to vector<16x1xf32>
    %9 = arith.addf %7, %8 : vector<16x1xf32>
    %cst_10 = arith.constant 1.000000e+00 : f32
    %10 = vector.broadcast %cst_10 : f32 to vector<16x1xf32>
    %11 = arith.divf %10, %9 : vector<16x1xf32>
    %12 = vector.extract_strided_slice %6 {offsets = [0, 0], sizes = [16, 32], strides = [1, 1]} : vector<16x33xf32> to vector<16x32xf32>
    %13 = vector.extract_strided_slice %5 {offsets = [0, 0], sizes = [16, 32], strides = [1, 1]} : vector<16x33xf32> to vector<16x32xf32>
    %14 = arith.addf %12, %13 : vector<16x32xf32>
    %15 = vector.broadcast %11 : vector<16x1xf32> to vector<16x32xf32>
    %16 = arith.mulf %14, %15 : vector<16x32xf32>
    %cst_11 = arith.constant dense<0.000000e+00> : vector<16x128xf32>
    %17 = tpu.matmul %16, %0, %cst_11 {dimension_numbers = #tpu.dot_dimension_numbers<[1], [0], [0], [1], [0, 0, 1, 1], [], []>} : vector<16x32xf32>, vector<32x128xf32>, vector<16x128xf32> -> vector<16x128xf32>
    %18 = vector.broadcast %1 : vector<1x128xf32> to vector<16x128xf32>
    %19 = arith.addf %17, %18 : vector<16x128xf32>
    %cst_12 = arith.constant 0.000000e+00 : f32
    %20 = vector.broadcast %cst_12 : f32 to vector<16x128xf32>
    %21 = arith.maximumf %19, %20 : vector<16x128xf32>
    %c0_13 = arith.constant 0 : index
    %c0_14 = arith.constant 0 : index
    %c0_15 = arith.constant 0 : index
    %22 = vector.load %arg5[%c0_13, %c0_14, %c0_15] : memref<2x16x128xf32, #tpu.memory_space<vmem>>, vector<1x16x128xf32>
    %23 = vector.shape_cast %22 : vector<1x16x128xf32> to vector<16x128xf32>
    %24 = vector.shape_cast %21 : vector<16x128xf32> to vector<1x16x128xf32>
    tpu.vector_store %arg5[%c0_13, %c0_14, %c0_15], %24 {strides = array<i32>} : memref<2x16x128xf32, #tpu.memory_space<vmem>>, vector<1x16x128xf32>,
    %c1 = arith.constant 1 : index
    %c0_16 = arith.constant 0 : index
    %c0_17 = arith.constant 0 : index
    %25 = vector.load %arg2[%c1, %c0_16, %c0_17] : memref<2x16x16xf32, #tpu.memory_space<vmem>>, vector<1x16x16xf32>
    %26 = vector.shape_cast %25 : vector<1x16x16xf32> to vector<16x16xf32>
    %c1_18 = arith.constant 1 : index
    %c0_19 = arith.constant 0 : index
    %c0_20 = arith.constant 0 : index
    %27 = vector.load %arg1[%c1_18, %c0_19, %c0_20] : memref<2x16x33xf32, #tpu.memory_space<vmem>>, vector<1x16x33xf32>
    %28 = vector.shape_cast %27 : vector<1x16x33xf32> to vector<16x33xf32>
    %cst_21 = arith.constant dense<0.000000e+00> : vector<16x33xf32>
    %29 = tpu.matmul %26, %28, %cst_21 {dimension_numbers = #tpu.dot_dimension_numbers<[1], [0], [0], [1], [0, 0, 1, 1], [], []>} : vector<16x16xf32>, vector<16x33xf32>, vector<16x33xf32> -> vector<16x33xf32>
    %30 = vector.extract_strided_slice %29 {offsets = [0, 32], sizes = [16, 1], strides = [1, 1]} : vector<16x33xf32> to vector<16x1xf32>
    %cst_22 = arith.constant 1.000000e+00 : f32
    %31 = vector.broadcast %cst_22 : f32 to vector<16x1xf32>
    %32 = arith.addf %30, %31 : vector<16x1xf32>
    %cst_23 = arith.constant 1.000000e+00 : f32
    %33 = vector.broadcast %cst_23 : f32 to vector<16x1xf32>
    %34 = arith.divf %33, %32 : vector<16x1xf32>
    %35 = vector.extract_strided_slice %29 {offsets = [0, 0], sizes = [16, 32], strides = [1, 1]} : vector<16x33xf32> to vector<16x32xf32>
    %36 = vector.extract_strided_slice %28 {offsets = [0, 0], sizes = [16, 32], strides = [1, 1]} : vector<16x33xf32> to vector<16x32xf32>
    %37 = arith.addf %35, %36 : vector<16x32xf32>
    %38 = vector.broadcast %34 : vector<16x1xf32> to vector<16x32xf32>
    %39 = arith.mulf %37, %38 : vector<16x32xf32>
    %cst_24 = arith.constant dense<0.000000e+00> : vector<16x128xf32>
    %40 = tpu.matmul %39, %0, %cst_24 {dimension_numbers = #tpu.dot_dimension_numbers<[1], [0], [0], [1], [0, 0, 1, 1], [], []>} : vector<16x32xf32>, vector<32x128xf32>, vector<16x128xf32> -> vector<16x128xf32>
    %41 = vector.broadcast %1 : vector<1x128xf32> to vector<16x128xf32>
    %42 = arith.addf %40, %41 : vector<16x128xf32>
    %cst_25 = arith.constant 0.000000e+00 : f32
    %43 = vector.broadcast %cst_25 : f32 to vector<16x128xf32>
    %44 = arith.maximumf %42, %43 : vector<16x128xf32>
    %c1_26 = arith.constant 1 : index
    %c0_27 = arith.constant 0 : index
    %c0_28 = arith.constant 0 : index
    %45 = vector.load %arg5[%c1_26, %c0_27, %c0_28] : memref<2x16x128xf32, #tpu.memory_space<vmem>>, vector<1x16x128xf32>
    %46 = vector.shape_cast %45 : vector<1x16x128xf32> to vector<16x128xf32>
    %47 = vector.shape_cast %44 : vector<16x128xf32> to vector<1x16x128xf32>
    tpu.vector_store %arg5[%c1_26, %c0_27, %c0_28], %47 {strides = array<i32>} : memref<2x16x128xf32, #tpu.memory_space<vmem>>, vector<1x16x128xf32>,
    return
  }
  func.func @transform_0(%arg0: i32) -> (i32, i32, i32) {
    %c0_i32 = arith.constant 0 : i32
    %c0_i32_0 = arith.constant 0 : i32
    %c0_i32_1 = arith.constant 0 : i32
    return %arg0, %c0_i32, %c0_i32_0 : i32, i32, i32
  }
  func.func @transform_1(%arg0: i32) -> (i32, i32, i32) {
    %c0_i32 = arith.constant 0 : i32
    %c0_i32_0 = arith.constant 0 : i32
    %c0_i32_1 = arith.constant 0 : i32
    return %arg0, %c0_i32, %c0_i32_0 : i32, i32, i32
  }
  func.func @transform_2(%arg0: i32) -> (i32, i32) {
    %c0_i32 = arith.constant 0 : i32
    %c0_i32_0 = arith.constant 0 : i32
    %c0_i32_1 = arith.constant 0 : i32
    return %c0_i32, %c0_i32_0 : i32, i32
  }
  func.func @transform_3(%arg0: i32) -> (i32, i32) {
    %c0_i32 = arith.constant 0 : i32
    %c0_i32_0 = arith.constant 0 : i32
    %c0_i32_1 = arith.constant 0 : i32
    return %c0_i32, %c0_i32_0 : i32, i32
  }
  func.func @transform_4(%arg0: i32) -> (i32, i32, i32) {
    %c0_i32 = arith.constant 0 : i32
    %c0_i32_0 = arith.constant 0 : i32
    %c0_i32_1 = arith.constant 0 : i32
    return %arg0, %c0_i32, %c0_i32_0 : i32, i32, i32
  }
}

</mosaic_0001>

<llo_original>
// kernel: tpu_custom_call.1
$region0: #{tpu_custom_call.1}
  #allocation0 [shape = 'u32[]', space=smem, size = 0x4, offset = 0x4, fixed_abs, tag = 'smem constant byte address 0x4 - core index']
  #allocation1 [shape = 'u32[144,128]{1,0:T(1,128)}', space=vmem, size = 0x12000, scoped, tag = 'internal scratch']
  %s0 = inlined_call_operand.hbm [shape: f32[2,16,33], index: 0, kind: input, shape index: {}]
  %s1 = inlined_call_operand.hbm [shape: f32[2,16,16], index: 1, kind: input, shape index: {}]
  %s2 = inlined_call_operand.hbm [shape: f32[32,128], index: 2, kind: input, shape index: {}]
  %s3 = inlined_call_operand.vmem [shape: f32[1,128], index: 3, kind: input, shape index: {}]
  %s4 = inlined_call_operand.hbm [shape: f32[2,16,128], index: 4, kind: output, shape index: {}]
  %s5 = sld [smem:[#allocation0]]
  $region38: #{tpu_custom_call.1} parent=0
    _
  %s7 = ssub.s32 1, %s5
  %s8 = scalar_select 0, %s7, %s5
  $region1: #{tpu_custom_call.1} parent=0
    #allocation2 [shape = 'u8[16384]{0}', space=vmem, size = 0x4000, scoped, tag = 'input window, operand 0, single buffered']
    #allocation3 [shape = 's32[1]{0}', space=sflag, size = 0x4, scoped, tag = 'scoped memory for tpu_custom_call.1']
    #allocation4 [shape = 's32[1]{0}', space=sflag, size = 0x4, scoped, tag = 'scoped memory for tpu_custom_call.1']
    #allocation5 [shape = 'u8[16384]{0}', space=vmem, size = 0x4000, scoped, tag = 'input window, operand 1, single buffered']
    #allocation6 [shape = 's32[1]{0}', space=sflag, size = 0x4, scoped, tag = 'scoped memory for tpu_custom_call.1']
    #allocation7 [shape = 'u8[16384]{0}', space=vmem, size = 0x4000, scoped, tag = 'input window, operand 2, single buffered']
    #allocation8 [shape = 'u8[16384]{0}', space=vmem, size = 0x4000, scoped, tag = 'output window, operand 0, single buffered']
    %9 = vsyncpa [#allocation3], 0
    %10 = vsyncpa [#allocation6], 0
    %11 = vsyncpa [#allocation4], 0
    // Predicated region
    $region2: #{tpu_custom_call.1} parent=1 // pred_check
      _
    $region3: #{tpu_custom_call.1} parent=1 // pred_check_branch
      %13 = sbr.rel (0) target = $region5
    $region4: #{tpu_custom_call.1} parent=1 // pred_region
      %s15 = ssub.s32 512, 512
      %16 = vsyncadd [#allocation3], %s15
      %s17 = sshll.u32 [#allocation2], 4
      %s18 = int_to_ptr.vmem [resolvable:$true] %s17
      %23 = dma.hbm_to_vmem [thread:$0]  %s0, 512, %s18, [#allocation3], 128, 128, 8
    $region5: #{tpu_custom_call.1} parent=1 // pred_fallthru
      _
    // Predicated region
    $region6: #{tpu_custom_call.1} parent=1 // pred_check
      _
    $region7: #{tpu_custom_call.1} parent=1 // pred_check_branch
      %25 = sbr.rel (0) target = $region9
    $region8: #{tpu_custom_call.1} parent=1 // pred_region
      %s27 = ssub.s32 512, 512
      %28 = vsyncadd [#allocation6], %s27
      %s29 = sshll.u32 [#allocation5], 4
      %s30 = int_to_ptr.vmem [resolvable:$true] %s29
      %35 = dma.hbm_to_vmem [thread:$0]  %s1, 512, %s30, [#allocation6], 128, 128, 8
    $region9: #{tpu_custom_call.1} parent=1 // pred_fallthru
      _
    // Predicated region
    $region10: #{tpu_custom_call.1} parent=1 // pred_check
      _
    $region11: #{tpu_custom_call.1} parent=1 // pred_check_branch
      %37 = sbr.rel (0) target = $region13
    $region12: #{tpu_custom_call.1} parent=1 // pred_region
      %s39 = ssub.s32 512, 512
      %40 = vsyncadd [#allocation6], %s39
      %s41 = sshll.u32 [#allocation7], 4
      %s42 = int_to_ptr.vmem [resolvable:$true] %s41
      %47 = dma.hbm_to_vmem [thread:$0]  %s2, 512, %s42, [#allocation6], 128, 128, 8
    $region13: #{tpu_custom_call.1} parent=1 // pred_fallthru
      _
    // Predicated region
    $region14: #{tpu_custom_call.1} parent=1 // pred_check
      _
    $region15: #{tpu_custom_call.1} parent=1 // pred_check_branch
      %49 = sbr.rel (0) target = $region17
    $region16: #{tpu_custom_call.1} parent=1 // pred_region
      _
    $region17: #{tpu_custom_call.1} parent=1 // pred_fallthru
      _
    // Predicated region
    $region18: #{tpu_custom_call.1} parent=1 // pred_check
      _
    $region19: #{tpu_custom_call.1} parent=1 // pred_check_branch
      %51 = sbr.rel (0) target = $region21
    $region20: #{tpu_custom_call.1} parent=1 // pred_region
      %52 = dma.done [#allocation3], 512
    $region21: #{tpu_custom_call.1} parent=1 // pred_fallthru
      _
    // Predicated region
    $region22: #{tpu_custom_call.1} parent=1 // pred_check
      _
    $region23: #{tpu_custom_call.1} parent=1 // pred_check_branch
      %54 = sbr.rel (0) target = $region25
    $region24: #{tpu_custom_call.1} parent=1 // pred_region
      %55 = dma.done [#allocation6], 512
    $region25: #{tpu_custom_call.1} parent=1 // pred_fallthru
      _
    // Predicated region
    $region26: #{tpu_custom_call.1} parent=1 // pred_check
      _
    $region27: #{tpu_custom_call.1} parent=1 // pred_check_branch
      %57 = sbr.rel (0) target = $region29
    $region28: #{tpu_custom_call.1} parent=1 // pred_region
      %58 = dma.done [#allocation6], 512
    $region29: #{tpu_custom_call.1} parent=1 // pred_fallthru
      _
    %v59 = vld [vmem:[#allocation7] sm:$0xff]
    %v60 = vld [vmem:[#allocation7 + $0x8] sm:$0xff]
    %v61 = vld [vmem:[#allocation7 + $0x10] sm:$0xff]
    %v62 = vld [vmem:[#allocation7 + $0x18] sm:$0xff]
    %v63 = vld [vmem:[%s3] sm:$0x1]
    %v64 = vld [vmem:[#allocation5] sm:$0xff]
    %v65 = vld [vmem:[#allocation5 + $0x8] sm:$0xff]
    %v66 = vld [vmem:[#allocation2] sm:$0xff]
    %v67 = vld [vmem:[#allocation2 + $0x8] sm:$0xff]
    %vm68 = vcmask 130048
    %v70 = vsel %vm68, %v64, 0
    %v73 = vsel %vm68, %v65, 0
    %75 = vmatprep.subr.mxu0 0.0
    %76 = vmatpush1.msra.mxu0 %v66
    %77 = vmatprep.subr.mxu0 0.0
    %78 = vmatpush1.msra.mxu0 %v67
    %79 = vmatprep.subr.mxu0 0.0
    %80 = vmatpush1.msra.mxu0 0.0
    %81 = vmatprep.subr.mxu0 0.0
    %82 = vmatpush1.msra.mxu0 0.0
    %83 = vmatprep.subr.mxu0 0.0
    %84 = vmatpush1.msra.mxu0 0.0
    %85 = vmatprep.subr.mxu0 0.0
    %86 = vmatpush1.msra.mxu0 0.0
    %87 = vmatprep.subr.mxu0 0.0
    %88 = vmatpush1.msra.mxu0 0.0
    %89 = vmatprep.subr.mxu0 0.0
    %90 = vmatpush1.msra.mxu0 0.0
    %91 = vmatprep.subr.mxu0 0.0
    %92 = vmatpush1.msra.mxu0 0.0
    %93 = vmatprep.subr.mxu0 0.0
    %94 = vmatpush1.msra.mxu0 0.0
    %95 = vmatprep.subr.mxu0 0.0
    %96 = vmatpush1.msra.mxu0 0.0
    %97 = vmatprep.subr.mxu0 0.0
    %98 = vmatpush1.msra.mxu0 0.0
    %99 = vmatprep.subr.mxu0 0.0
    %100 = vmatpush1.msra.mxu0 0.0
    %101 = vmatprep.subr.mxu0 0.0
    %102 = vmatpush1.msra.mxu0 0.0
    %103 = vmatprep.subr.mxu0 0.0
    %104 = vmatpush1.msra.mxu0 0.0
    %105 = vmatprep.subr.mxu0 0.0
    %106 = vmatpush1.msra.mxu0 0.0
    %107 = vmatprep.subr.mxu0 0.0
    %108 = vmatpush1.msra.mxu0 0.0
    %109 = vmatprep.subr.mxu0 0.0
    %110 = vmatpush1.msra.mxu0 0.0
    %111 = vmatprep.subr.mxu0 0.0
    %112 = vmatpush1.msra.mxu0 0.0
    %113 = vmatprep.subr.mxu0 0.0
    %114 = vmatpush1.msra.mxu0 0.0
    %115 = vmatprep.subr.mxu0 0.0
    %116 = vmatpush1.msra.mxu0 0.0
    %117 = vmatprep.subr.mxu0 0.0
    %118 = vmatpush1.msra.mxu0 0.0
    %119 = vmatprep.subr.mxu0 0.0
    %120 = vmatpush1.msra.mxu0 0.0
    %121 = vmatprep.subr.mxu0 0.0
    %122 = vmatpush1.msra.mxu0 0.0
    %123 = vmatprep.subr.mxu0 0.0
    %124 = vmatpush1.msra.mxu0 0.0
    %125 = vmatprep.subr.mxu0 0.0
    %126 = vmatpush1.msra.mxu0 0.0
    %127 = vmatprep.subr.mxu0 0.0
    %128 = vmatpush1.msra.mxu0 0.0
    %129 = vmatprep.subr.mxu0 0.0
    %130 = vmatpush1.msra.mxu0 0.0
    %131 = vmatprep.subr.mxu0 0.0
    %132 = vmatpush1.msra.mxu0 0.0
    %133 = vmatprep.subr.mxu0 0.0
    %134 = vmatpush1.msra.mxu0 0.0
    %135 = vmatprep.subr.mxu0 0.0
    %136 = vmatpush1.msra.mxu0 0.0
    %137 = vmatprep.subr.mxu0 0.0
    %138 = vmatpush1.msra.mxu0 0.0
    %139 = vmatprep.mubr.f32.mxu0 0.0
    %140 = vmatmul.mubr.f32.gmra.mrb[0].mxu0 %v70
    %v141 = vpop.f32.mrb[0].mxu0
    %v142 = vadd.f32 0.0, %v141
    %v143 = vpop.f32.mrb[0].mxu0
    %144 = vmatprep.mubr.f32.mxu0 0.0
    %145 = vmatmul.mubr.f32.gmra.mrb[0].mxu0 %v73
    %v146 = vpop.f32.mrb[0].mxu0
    %v147 = vadd.f32 0.0, %v146
    %v148 = vpop.f32.mrb[0].mxu0
    %149 = vdwg.mxu0
    %v150 = vadd.f32 %v142, 1.0
    %v151 = vadd.f32 %v147, 1.0
    %v152 = vrcp.pop %v150
    %v153 = vmul.f32 1.0, %v152
    %v154 = vrcp.pop %v151
    %v155 = vmul.f32 1.0, %v154
    %v156 = vadd.f32 %v142, %v66
    %v157 = vadd.f32 %v147, %v67
    %159 = vset.pattern.permute.xlu0 32
    %160 = vperm.xlu0 %159, %v153
    %v161 = vpop.permute.xlu0 %160
    %164 = vset.pattern.permute.xlu0 32
    %165 = vperm.xlu0 %164, %v155
    %v166 = vpop.permute.xlu0 %165
    %v168 = vmul.f32 %v156, %v161
    %v169 = vmul.f32 %v157, %v166
    %v171 = vlaneseq
    %v172 = vshrl.u32 %v171, 7
    %v173 = vsub.s32 0, %v172
    %v174 = vrot.slane %v63, %v173
    %vm176 = vcmask 261120
    %v178 = vsel %vm176, %v168, 0
    %v181 = vsel %vm176, %v169, 0
    %183 = vmatprep.subr.mxu0 0.0
    %184 = vmatpush1.msra.mxu0 %v59
    %185 = vmatprep.subr.mxu0 0.0
    %186 = vmatpush1.msra.mxu0 %v60
    %187 = vmatprep.subr.mxu0 0.0
    %188 = vmatpush1.msra.mxu0 %v61
    %189 = vmatprep.subr.mxu0 0.0
    %190 = vmatpush1.msra.mxu0 %v62
    %191 = vmatprep.subr.mxu0 0.0
    %192 = vmatpush1.msra.mxu0 0.0
    %193 = vmatprep.subr.mxu0 0.0
    %194 = vmatpush1.msra.mxu0 0.0
    %195 = vmatprep.subr.mxu0 0.0
    %196 = vmatpush1.msra.mxu0 0.0
    %197 = vmatprep.subr.mxu0 0.0
    %198 = vmatpush1.msra.mxu0 0.0
    %199 = vmatprep.subr.mxu0 0.0
    %200 = vmatpush1.msra.mxu0 0.0
    %201 = vmatprep.subr.mxu0 0.0
    %202 = vmatpush1.msra.mxu0 0.0
    %203 = vmatprep.subr.mxu0 0.0
    %204 = vmatpush1.msra.mxu0 0.0
    %205 = vmatprep.subr.mxu0 0.0
    %206 = vmatpush1.msra.mxu0 0.0
    %207 = vmatprep.subr.mxu0 0.0
    %208 = vmatpush1.msra.mxu0 0.0
    %209 = vmatprep.subr.mxu0 0.0
    %210 = vmatpush1.msra.mxu0 0.0
    %211 = vmatprep.subr.mxu0 0.0
    %212 = vmatpush1.msra.mxu0 0.0
    %213 = vmatprep.subr.mxu0 0.0
    %214 = vmatpush1.msra.mxu0 0.0
    %215 = vmatprep.subr.mxu0 0.0
    %216 = vmatpush1.msra.mxu0 0.0
    %217 = vmatprep.subr.mxu0 0.0
    %218 = vmatpush1.msra.mxu0 0.0
    %219 = vmatprep.subr.mxu0 0.0
    %220 = vmatpush1.msra.mxu0 0.0
    %221 = vmatprep.subr.mxu0 0.0
    %222 = vmatpush1.msra.mxu0 0.0
    %223 = vmatprep.subr.mxu0 0.0
    %224 = vmatpush1.msra.mxu0 0.0
    %225 = vmatprep.subr.mxu0 0.0
    %226 = vmatpush1.msra.mxu0 0.0
    %227 = vmatprep.subr.mxu0 0.0
    %228 = vmatpush1.msra.mxu0 0.0
    %229 = vmatprep.subr.mxu0 0.0
    %230 = vmatpush1.msra.mxu0 0.0
    %231 = vmatprep.subr.mxu0 0.0
    %232 = vmatpush1.msra.mxu0 0.0
    %233 = vmatprep.subr.mxu0 0.0
    %234 = vmatpush1.msra.mxu0 0.0
    %235 = vmatprep.subr.mxu0 0.0
    %236 = vmatpush1.msra.mxu0 0.0
    %237 = vmatprep.subr.mxu0 0.0
    %238 = vmatpush1.msra.mxu0 0.0
    %239 = vmatprep.subr.mxu0 0.0
    %240 = vmatpush1.msra.mxu0 0.0
    %241 = vmatprep.subr.mxu0 0.0
    %242 = vmatpush1.msra.mxu0 0.0
    %243 = vmatprep.subr.mxu0 0.0
    %244 = vmatpush1.msra.mxu0 0.0
    %245 = vmatprep.subr.mxu0 0.0
    %246 = vmatpush1.msra.mxu0 0.0
    %247 = vmatprep.mubr.f32.mxu0 0.0
    %248 = vmatmul.mubr.f32.gmra.mrb[0].mxu0 %v178
    %v249 = vpop.f32.mrb[0].mxu0
    %v250 = vadd.f32 %v174, %v249
    %v251 = vpop.f32.mrb[0].mxu0
    %252 = vmatprep.mubr.f32.mxu0 0.0
    %253 = vmatmul.mubr.f32.gmra.mrb[0].mxu0 %v181
    %v254 = vpop.f32.mrb[0].mxu0
    %v255 = vadd.f32 %v174, %v254
    %v256 = vpop.f32.mrb[0].mxu0
    %257 = vdwg.mxu0
    %v258 = vmax.f32 %v250, 0.0
    %v259 = vmax.f32 %v255, 0.0
    %260 = vst [vmem:[#allocation8] sm:$0xff] %v258
    %261 = vst [vmem:[#allocation8 + $0x8] sm:$0xff] %v259
    %s262 = scalar_lea.vmem [#allocation5], 16
    %v263 = vld [vmem:[%s262] sm:$0xff]
    %v264 = vld [vmem:[%s262 + $0x8] sm:$0xff]
    %s265 = scalar_lea.vmem [#allocation2], 16
    %v266 = vld [vmem:[%s265] sm:$0xff]
    %v267 = vld [vmem:[%s265 + $0x8] sm:$0xff]
    %v269 = vsel %vm68, %v263, 0
    %v272 = vsel %vm68, %v264, 0
    %274 = vmatprep.subr.mxu0 0.0
    %275 = vmatpush1.msra.mxu0 %v266
    %276 = vmatprep.subr.mxu0 0.0
    %277 = vmatpush1.msra.mxu0 %v267
    %278 = vmatprep.subr.mxu0 0.0
    %279 = vmatpush1.msra.mxu0 0.0
    %280 = vmatprep.subr.mxu0 0.0
    %281 = vmatpush1.msra.mxu0 0.0
    %282 = vmatprep.subr.mxu0 0.0
    %283 = vmatpush1.msra.mxu0 0.0
    %284 = vmatprep.subr.mxu0 0.0
    %285 = vmatpush1.msra.mxu0 0.0
    %286 = vmatprep.subr.mxu0 0.0
    %287 = vmatpush1.msra.mxu0 0.0
    %288 = vmatprep.subr.mxu0 0.0
    %289 = vmatpush1.msra.mxu0 0.0
    %290 = vmatprep.subr.mxu0 0.0
    %291 = vmatpush1.msra.mxu0 0.0
    %292 = vmatprep.subr.mxu0 0.0
    %293 = vmatpush1.msra.mxu0 0.0
    %294 = vmatprep.subr.mxu0 0.0
    %295 = vmatpush1.msra.mxu0 0.0
    %296 = vmatprep.subr.mxu0 0.0
    %297 = vmatpush1.msra.mxu0 0.0
    %298 = vmatprep.subr.mxu0 0.0
    %299 = vmatpush1.msra.mxu0 0.0
    %300 = vmatprep.subr.mxu0 0.0
    %301 = vmatpush1.msra.mxu0 0.0
    %302 = vmatprep.subr.mxu0 0.0
    %303 = vmatpush1.msra.mxu0 0.0
    %304 = vmatprep.subr.mxu0 0.0
    %305 = vmatpush1.msra.mxu0 0.0
    %306 = vmatprep.subr.mxu0 0.0
    %307 = vmatpush1.msra.mxu0 0.0
    %308 = vmatprep.subr.mxu0 0.0
    %309 = vmatpush1.msra.mxu0 0.0
    %310 = vmatprep.subr.mxu0 0.0
    %311 = vmatpush1.msra.mxu0 0.0
    %312 = vmatprep.subr.mxu0 0.0
    %313 = vmatpush1.msra.mxu0 0.0
    %314 = vmatprep.subr.mxu0 0.0
    %315 = vmatpush1.msra.mxu0 0.0
    %316 = vmatprep.subr.mxu0 0.0
    %317 = vmatpush1.msra.mxu0 0.0
    %318 = vmatprep.subr.mxu0 0.0
    %319 = vmatpush1.msra.mxu0 0.0
    %320 = vmatprep.subr.mxu0 0.0
    %321 = vmatpush1.msra.mxu0 0.0
    %322 = vmatprep.subr.mxu0 0.0
    %323 = vmatpush1.msra.mxu0 0.0
    %324 = vmatprep.subr.mxu0 0.0
    %325 = vmatpush1.msra.mxu0 0.0
    %326 = vmatprep.subr.mxu0 0.0
    %327 = vmatpush1.msra.mxu0 0.0
    %328 = vmatprep.subr.mxu0 0.0
    %329 = vmatpush1.msra.mxu0 0.0
    %330 = vmatprep.subr.mxu0 0.0
    %331 = vmatpush1.msra.mxu0 0.0
    %332 = vmatprep.subr.mxu0 0.0
    %333 = vmatpush1.msra.mxu0 0.0
    %334 = vmatprep.subr.mxu0 0.0
    %335 = vmatpush1.msra.mxu0 0.0
    %336 = vmatprep.subr.mxu0 0.0
    %337 = vmatpush1.msra.mxu0 0.0
    %338 = vmatprep.mubr.f32.mxu0 0.0
    %339 = vmatmul.mubr.f32.gmra.mrb[0].mxu0 %v269
    %v340 = vpop.f32.mrb[0].mxu0
    %v341 = vadd.f32 0.0, %v340
    %v342 = vpop.f32.mrb[0].mxu0
    %343 = vmatprep.mubr.f32.mxu0 0.0
    %344 = vmatmul.mubr.f32.gmra.mrb[0].mxu0 %v272
    %v345 = vpop.f32.mrb[0].mxu0
    %v346 = vadd.f32 0.0, %v345
    %v347 = vpop.f32.mrb[0].mxu0
    %348 = vdwg.mxu0
    %v349 = vadd.f32 %v341, 1.0
    %v350 = vadd.f32 %v346, 1.0
    %v351 = vrcp.pop %v349
    %v352 = vmul.f32 1.0, %v351
    %v353 = vrcp.pop %v350
    %v354 = vmul.f32 1.0, %v353
    %v355 = vadd.f32 %v341, %v266
    %v356 = vadd.f32 %v346, %v267
    %358 = vset.pattern.permute.xlu0 32
    %359 = vperm.xlu0 %358, %v352
    %v360 = vpop.permute.xlu0 %359
    %363 = vset.pattern.permute.xlu0 32
    %364 = vperm.xlu0 %363, %v354
    %v365 = vpop.permute.xlu0 %364
    %v367 = vmul.f32 %v355, %v360
    %v368 = vmul.f32 %v356, %v365
    %v370 = vsel %vm176, %v367, 0
    %v373 = vsel %vm176, %v368, 0
    %375 = vmatprep.subr.mxu0 0.0
    %376 = vmatpush1.msra.mxu0 %v59
    %377 = vmatprep.subr.mxu0 0.0
    %378 = vmatpush1.msra.mxu0 %v60
    %379 = vmatprep.subr.mxu0 0.0
    %380 = vmatpush1.msra.mxu0 %v61
    %381 = vmatprep.subr.mxu0 0.0
    %382 = vmatpush1.msra.mxu0 %v62
    %383 = vmatprep.subr.mxu0 0.0
    %384 = vmatpush1.msra.mxu0 0.0
    %385 = vmatprep.subr.mxu0 0.0
    %386 = vmatpush1.msra.mxu0 0.0
    %387 = vmatprep.subr.mxu0 0.0
    %388 = vmatpush1.msra.mxu0 0.0
    %389 = vmatprep.subr.mxu0 0.0
    %390 = vmatpush1.msra.mxu0 0.0
    %391 = vmatprep.subr.mxu0 0.0
    %392 = vmatpush1.msra.mxu0 0.0
    %393 = vmatprep.subr.mxu0 0.0
    %394 = vmatpush1.msra.mxu0 0.0
    %395 = vmatprep.subr.mxu0 0.0
    %396 = vmatpush1.msra.mxu0 0.0
    %397 = vmatprep.subr.mxu0 0.0
    %398 = vmatpush1.msra.mxu0 0.0
    %399 = vmatprep.subr.mxu0 0.0
    %400 = vmatpush1.msra.mxu0 0.0
    %401 = vmatprep.subr.mxu0 0.0
    %402 = vmatpush1.msra.mxu0 0.0
    %403 = vmatprep.subr.mxu0 0.0
    %404 = vmatpush1.msra.mxu0 0.0
    %405 = vmatprep.subr.mxu0 0.0
    %406 = vmatpush1.msra.mxu0 0.0
    %407 = vmatprep.subr.mxu0 0.0
    %408 = vmatpush1.msra.mxu0 0.0
    %409 = vmatprep.subr.mxu0 0.0
    %410 = vmatpush1.msra.mxu0 0.0
    %411 = vmatprep.subr.mxu0 0.0
    %412 = vmatpush1.msra.mxu0 0.0
    %413 = vmatprep.subr.mxu0 0.0
    %414 = vmatpush1.msra.mxu0 0.0
    %415 = vmatprep.subr.mxu0 0.0
    %416 = vmatpush1.msra.mxu0 0.0
    %417 = vmatprep.subr.mxu0 0.0
    %418 = vmatpush1.msra.mxu0 0.0
    %419 = vmatprep.subr.mxu0 0.0
    %420 = vmatpush1.msra.mxu0 0.0
    %421 = vmatprep.subr.mxu0 0.0
    %422 = vmatpush1.msra.mxu0 0.0
    %423 = vmatprep.subr.mxu0 0.0
    %424 = vmatpush1.msra.mxu0 0.0
    %425 = vmatprep.subr.mxu0 0.0
    %426 = vmatpush1.msra.mxu0 0.0
    %427 = vmatprep.subr.mxu0 0.0
    %428 = vmatpush1.msra.mxu0 0.0
    %429 = vmatprep.subr.mxu0 0.0
    %430 = vmatpush1.msra.mxu0 0.0
    %431 = vmatprep.subr.mxu0 0.0
    %432 = vmatpush1.msra.mxu0 0.0
    %433 = vmatprep.subr.mxu0 0.0
    %434 = vmatpush1.msra.mxu0 0.0
    %435 = vmatprep.subr.mxu0 0.0
    %436 = vmatpush1.msra.mxu0 0.0
    %437 = vmatprep.subr.mxu0 0.0
    %438 = vmatpush1.msra.mxu0 0.0
    %439 = vmatprep.mubr.f32.mxu0 0.0
    %440 = vmatmul.mubr.f32.gmra.mrb[0].mxu0 %v370
    %v441 = vpop.f32.mrb[0].mxu0
    %v442 = vadd.f32 %v174, %v441
    %v443 = vpop.f32.mrb[0].mxu0
    %444 = vmatprep.mubr.f32.mxu0 0.0
    %445 = vmatmul.mubr.f32.gmra.mrb[0].mxu0 %v373
    %v446 = vpop.f32.mrb[0].mxu0
    %v447 = vadd.f32 %v174, %v446
    %v448 = vpop.f32.mrb[0].mxu0
    %449 = vdwg.mxu0
    %v450 = vmax.f32 %v442, 0.0
    %v451 = vmax.f32 %v447, 0.0
    %s452 = scalar_lea.vmem [#allocation8], 16
    %453 = vst [vmem:[%s452] sm:$0xff] %v450
    %454 = vst [vmem:[%s452 + $0x8] sm:$0xff] %v451
    // Predicated region
    $region30: #{tpu_custom_call.1} parent=1 // pred_check
      _
    $region31: #{tpu_custom_call.1} parent=1 // pred_check_branch
      %456 = sbr.rel (0) target = $region33
    $region32: #{tpu_custom_call.1} parent=1 // pred_region
      %s458 = ssub.s32 512, 512
      %459 = vsyncadd [#allocation4], %s458
      %s460 = sshll.u32 [#allocation8], 4
      %s461 = int_to_ptr.vmem [resolvable:$true] %s460
      %466 = dma.vmem_to_hbm [thread:$0]  %s461, 512, %s4, [#allocation4], 128, 128, 8
    $region33: #{tpu_custom_call.1} parent=1 // pred_fallthru
      _
    // Predicated region
    $region34: #{tpu_custom_call.1} parent=1 // pred_check
      _
    $region35: #{tpu_custom_call.1} parent=1 // pred_check_branch
      %468 = sbr.rel (0) target = $region37
    $region36: #{tpu_custom_call.1} parent=1 // pred_region
      %469 = dma.done [#allocation4], 512
    $region37: #{tpu_custom_call.1} parent=1 // pred_fallthru
      _
    %470 = vsyncpa [#allocation3], 1
    %471 = vsyncpa [#allocation6], 1
    %472 = vsyncpa [#allocation4], 1

</llo_original>
